<compile_context>
chip_gen: v6e
topology: v6e:2x2x1
jax: 0.10.0
libtpu: 0.0.40
codegen_flags: <defaults>
</compile_context>

<pallas_src>
import math
from functools import partial

import jax
import jax.numpy as jnp
from jax.experimental import pallas as pl
from jax.experimental.pallas import tpu as pltpu

IN_FEATURES = 28 * 28   # 784
HID = 64
OUT = 10
OUT_PAD = 128           # lane-dense output width (unmasked stores)


def ffnn_kernel(x_ref, w1_ref, b1_ref, w3_ref, b3_ref, o_ref):
    # x_ref:  (TB, 784)   w1_ref: (784, 64)  b1_ref: (1, 64)
    # w3_ref: (64, 128)   b3_ref: (1, 128)   o_ref:  (TB, 128)
    h = jnp.dot(x_ref[...], w1_ref[...],
                preferred_element_type=jnp.float32) + b1_ref[...]
    h = jnp.maximum(h, 0.0)                                   # ReLU on the VPU
    y = jnp.dot(h, w3_ref[...],
                preferred_element_type=jnp.float32) + b3_ref[...]
    o_ref[...] = y.astype(o_ref.dtype)


def _pad_last(a, new_last):
    """Zero-pad the last dim of a 2-D array (exact-math padding)."""
    if a.shape[-1] == new_last:
        return a
    return jnp.pad(a, ((0, 0), (0, new_last - a.shape[-1])))


@partial(jax.jit, static_argnames=("max_tile",))
def ffnn_forward(x, w1, b1, w3, b3, *, max_tile=2048):
    """x: (B, 1, 28, 28) or (B, 784) float32 -> (B, 10) float32."""
    B = x.shape[0]
    x_flat = x.reshape(B, -1)                 # == torch x.view(x.size(0), -1)
    assert x_flat.shape[1] == IN_FEATURES

    # --- batch tiling: multiple of 8 (f32 sublane), tile of <= max_tile rows ---
    # 2048-row tile: x buffers = 2 * 2048*784*4 B ~= 12.5 MiB, out buffers ~= 2 MiB,
    # weights ~= 0.5 MiB  ->  ~15 MiB, well under the 32 MiB limit requested below.
    b8 = 8 * pl.cdiv(B, 8)
    tile_b = min(max_tile, b8)
    b_pad = tile_b * pl.cdiv(b8, tile_b)
    if b_pad != B:                             # only copy when actually ragged
        x_flat = jnp.pad(x_flat, ((0, b_pad - B), (0, 0)))
    grid = (b_pad // tile_b,)

    # --- only the tiny weight/bias tensors get lane-padded on the output dim ---
    w3_p = _pad_last(w3, OUT_PAD)              # (64, 128)
    b3_p = _pad_last(b3, OUT_PAD)              # (1, 128)

    flops = 2 * b_pad * (IN_FEATURES * HID + HID * OUT_PAD)
    bytes_accessed = 4 * (
        b_pad * IN_FEATURES                    # stream x
        + IN_FEATURES * HID + HID              # w1, b1 (loaded once)
        + HID * OUT_PAD + OUT_PAD              # w3, b3 (loaded once)
        + b_pad * OUT_PAD                      # output
    )

    out = pl.pallas_call(
        ffnn_kernel,
        out_shape=jax.ShapeDtypeStruct((b_pad, OUT_PAD), jnp.float32),
        grid_spec=pltpu.PrefetchScalarGridSpec(
            num_scalar_prefetch=0,
            grid=grid,
            in_specs=[
                pl.BlockSpec((tile_b, IN_FEATURES), lambda i: (i, 0)),  # x: streamed
                pl.BlockSpec((IN_FEATURES, HID), lambda i: (0, 0)),     # w1: resident
                pl.BlockSpec((1, HID), lambda i: (0, 0)),               # b1
                pl.BlockSpec((HID, OUT_PAD), lambda i: (0, 0)),         # w3
                pl.BlockSpec((1, OUT_PAD), lambda i: (0, 0)),           # b3
            ],
            out_specs=pl.BlockSpec((tile_b, OUT_PAD), lambda i: (i, 0)),
        ),
        compiler_params=pltpu.CompilerParams(
            dimension_semantics=("parallel",),   # batch axis: megacore-shardable
            vmem_limit_bytes=32 * 1024 * 1024,
        ),
        cost_estimate=pl.CostEstimate(
            flops=flops, transcendentals=0, bytes_accessed=bytes_accessed),
    )(x_flat, w1, b1, w3_p, b3_p)

    # Strip batch padding and the lane padding on the output dim.
    return out[:B, :OUT]


def init_params(key):
    """Deterministic init matching nn.Linear's default U(-1/sqrt(fan_in), +1/sqrt(fan_in))."""
    k1, k2, k3, k4 = jax.random.split(key, 4)
    bound1 = 1.0 / math.sqrt(IN_FEATURES)
    bound3 = 1.0 / math.sqrt(HID)
    # stored as (in, out) so the kernel computes x @ W + b
    w1 = jax.random.uniform(k1, (IN_FEATURES, HID), jnp.float32, -bound1, bound1)
    b1 = jax.random.uniform(k2, (1, HID), jnp.float32, -bound1, bound1)
    w3 = jax.random.uniform(k3, (HID, OUT), jnp.float32, -bound3, bound3)
    b3 = jax.random.uniform(k4, (1, OUT), jnp.float32, -bound3, bound3)
    return w1, b1, w3, b3


def reference_forward(x, w1, b1, w3, b3):
    x_flat = x.reshape(x.shape[0], -1)
    h = jnp.maximum(x_flat @ w1 + b1, 0.0)
    return h @ w3 + b3


if __name__ == "__main__":
    key = jax.random.PRNGKey(0)
    k_params, k_x = jax.random.split(key)

    w1, b1, w3, b3 = init_params(k_params)
    # small MNIST-like batch: (B, C, H, W) = (2, 1, 28, 28)
    x = jax.random.normal(k_x, (2, 1, 28, 28), jnp.float32)

    y = ffnn_forward(x, w1, b1, w3, b3)
    y = jax.block_until_ready(y)

    y_ref = reference_forward(x, w1, b1, w3, b3)
    assert y.shape == (2, 10)
    assert jnp.allclose(y, y_ref, atol=1e-4, rtol=1e-4), "mismatch vs JAX reference"

    print("KERNEL_OK")
</pallas_src>

<mosaic_0001>
module attributes {stable_mosaic.version = 11 : i64} {
  func.func @ffnn_kernel(%arg0: i32, %arg1: memref<8x784xf32, #tpu.memory_space<vmem>>, %arg2: memref<784x64xf32, #tpu.memory_space<vmem>>, %arg3: memref<1x64xf32, #tpu.memory_space<vmem>>, %arg4: memref<64x128xf32, #tpu.memory_space<vmem>>, %arg5: memref<1x128xf32, #tpu.memory_space<vmem>>, %arg6: memref<8x128xf32, #tpu.memory_space<vmem>>) attributes {dimension_semantics = [#tpu.dimension_semantics<parallel>], iteration_bounds = array<i64: 1>, scalar_prefetch = 0 : i64, scratch_operands = 0 : i64, tpu.core_type = #tpu.core_type<tc>, window_params = [{transform_indices = @transform_0, window_bounds = array<i64: 8, 784>}, {pipeline_mode = #tpu.pipeline_mode<synchronous>, transform_indices = @transform_1, window_bounds = array<i64: 784, 64>}, {pipeline_mode = #tpu.pipeline_mode<synchronous>, transform_indices = @transform_2, window_bounds = array<i64: 1, 64>}, {pipeline_mode = #tpu.pipeline_mode<synchronous>, transform_indices = @transform_3, window_bounds = array<i64: 64, 128>}, {pipeline_mode = #tpu.pipeline_mode<synchronous>, transform_indices = @transform_4, window_bounds = array<i64: 1, 128>}, {transform_indices = @transform_5, window_bounds = array<i64: 8, 128>}]} {
    %c0 = arith.constant 0 : index
    %c0_0 = arith.constant 0 : index
    %0 = vector.load %arg1[%c0, %c0_0] : memref<8x784xf32, #tpu.memory_space<vmem>>, vector<8x784xf32>
    %c0_1 = arith.constant 0 : index
    %c0_2 = arith.constant 0 : index
    %1 = vector.load %arg2[%c0_1, %c0_2] : memref<784x64xf32, #tpu.memory_space<vmem>>, vector<784x64xf32>
    %cst = arith.constant dense<0.000000e+00> : vector<8x64xf32>
    %2 = tpu.matmul %0, %1, %cst {dimension_numbers = #tpu.dot_dimension_numbers<[1], [0], [0], [1], [0, 0, 1, 1], [], []>} : vector<8x784xf32>, vector<784x64xf32>, vector<8x64xf32> -> vector<8x64xf32>
    %c0_3 = arith.constant 0 : index
    %c0_4 = arith.constant 0 : index
    %3 = vector.load %arg3[%c0_3, %c0_4] : memref<1x64xf32, #tpu.memory_space<vmem>>, vector<1x64xf32>
    %4 = vector.broadcast %3 : vector<1x64xf32> to vector<8x64xf32>
    %5 = arith.addf %2, %4 : vector<8x64xf32>
    %cst_5 = arith.constant 0.000000e+00 : f32
    %6 = vector.broadcast %cst_5 : f32 to vector<8x64xf32>
    %7 = arith.maximumf %5, %6 : vector<8x64xf32>
    %c0_6 = arith.constant 0 : index
    %c0_7 = arith.constant 0 : index
    %8 = vector.load %arg4[%c0_6, %c0_7] : memref<64x128xf32, #tpu.memory_space<vmem>>, vector<64x128xf32>
    %cst_8 = arith.constant dense<0.000000e+00> : vector<8x128xf32>
    %9 = tpu.matmul %7, %8, %cst_8 {dimension_numbers = #tpu.dot_dimension_numbers<[1], [0], [0], [1], [0, 0, 1, 1], [], []>} : vector<8x64xf32>, vector<64x128xf32>, vector<8x128xf32> -> vector<8x128xf32>
    %c0_9 = arith.constant 0 : index
    %c0_10 = arith.constant 0 : index
    %10 = vector.load %arg5[%c0_9, %c0_10] : memref<1x128xf32, #tpu.memory_space<vmem>>, vector<1x128xf32>
    %11 = vector.broadcast %10 : vector<1x128xf32> to vector<8x128xf32>
    %12 = arith.addf %9, %11 : vector<8x128xf32>
    %c0_11 = arith.constant 0 : index
    %c0_12 = arith.constant 0 : index
    %13 = vector.load %arg6[%c0_11, %c0_12] : memref<8x128xf32, #tpu.memory_space<vmem>>, vector<8x128xf32>
    tpu.vector_store %arg6[%c0_11, %c0_12], %12 {strides = array<i32>} : memref<8x128xf32, #tpu.memory_space<vmem>>, vector<8x128xf32>,
    return
  }
  func.func @transform_0(%arg0: i32) -> (i32, i32) {
    %c0_i32 = arith.constant 0 : i32
    %c0_i32_0 = arith.constant 0 : i32
    return %arg0, %c0_i32 : i32, i32
  }
  func.func @transform_1(%arg0: i32) -> (i32, i32) {
    %c0_i32 = arith.constant 0 : i32
    %c0_i32_0 = arith.constant 0 : i32
    %c0_i32_1 = arith.constant 0 : i32
    return %c0_i32, %c0_i32_0 : i32, i32
  }
  func.func @transform_2(%arg0: i32) -> (i32, i32) {
    %c0_i32 = arith.constant 0 : i32
    %c0_i32_0 = arith.constant 0 : i32
    %c0_i32_1 = arith.constant 0 : i32
    return %c0_i32, %c0_i32_0 : i32, i32
  }
  func.func @transform_3(%arg0: i32) -> (i32, i32) {
    %c0_i32 = arith.constant 0 : i32
    %c0_i32_0 = arith.constant 0 : i32
    %c0_i32_1 = arith.constant 0 : i32
    return %c0_i32, %c0_i32_0 : i32, i32
  }
  func.func @transform_4(%arg0: i32) -> (i32, i32) {
    %c0_i32 = arith.constant 0 : i32
    %c0_i32_0 = arith.constant 0 : i32
    %c0_i32_1 = arith.constant 0 : i32
    return %c0_i32, %c0_i32_0 : i32, i32
  }
  func.func @transform_5(%arg0: i32) -> (i32, i32) {
    %c0_i32 = arith.constant 0 : i32
    %c0_i32_0 = arith.constant 0 : i32
    return %arg0, %c0_i32 : i32, i32
  }
}

</mosaic_0001>

<llo_original>
// kernel: ffnn_forward.1
$region0: #{ffnn_forward.1}
  #allocation0 [shape = 'u32[]', space=smem, size = 0x4, offset = 0x4, fixed_abs, tag = 'smem constant byte address 0x4 - core index']
  #allocation1 [shape = 'u32[144,128]{1,0:T(1,128)}', space=vmem, size = 0x12000, scoped, tag = 'internal scratch']
  %s0 = inlined_call_operand.vmem [shape: f32[8,784], index: 0, kind: input, shape index: {}]
  %s1 = inlined_call_operand.vmem [shape: f32[784,64], index: 1, kind: input, shape index: {}]
  %s2 = inlined_call_operand.vmem [shape: f32[1,64], index: 2, kind: input, shape index: {}]
  %s3 = inlined_call_operand.vmem [shape: f32[64,128], index: 3, kind: input, shape index: {}]
  %s4 = inlined_call_operand.vmem [shape: f32[1,128], index: 4, kind: input, shape index: {}]
  %s5 = inlined_call_operand.vmem [shape: f32[8,128], index: 5, kind: output, shape index: {}]
  %s6 = sld [smem:[#allocation0]]
  $region30: #{ffnn_forward.1} parent=0
    _
  %s8 = ssub.s32 1, %s6
  %s9 = scalar_select 0, %s8, %s6
  // Predicated region
  $region2: #{ffnn_forward.1} parent=0 // pred_check
    _
  $region3: #{ffnn_forward.1} parent=0 // pred_check_branch
    %11 = sbr.rel (0) target = $region5
  $region4: #{ffnn_forward.1} parent=0 // pred_region
    _
  $region5: #{ffnn_forward.1} parent=0 // pred_fallthru
    _
  // Predicated region
  $region6: #{ffnn_forward.1} parent=0 // pred_check
    _
  $region7: #{ffnn_forward.1} parent=0 // pred_check_branch
    %13 = sbr.rel (0) target = $region9
  $region8: #{ffnn_forward.1} parent=0 // pred_region
    _
  $region9: #{ffnn_forward.1} parent=0 // pred_fallthru
    _
  // Predicated region
  $region10: #{ffnn_forward.1} parent=0 // pred_check
    _
  $region11: #{ffnn_forward.1} parent=0 // pred_check_branch
    %15 = sbr.rel (0) target = $region13
  $region12: #{ffnn_forward.1} parent=0 // pred_region
    _
  $region13: #{ffnn_forward.1} parent=0 // pred_fallthru
    _
  // Predicated region
  $region14: #{ffnn_forward.1} parent=0 // pred_check
    _
  $region15: #{ffnn_forward.1} parent=0 // pred_check_branch
    %17 = sbr.rel (0) target = $region17
  $region16: #{ffnn_forward.1} parent=0 // pred_region
    _
  $region17: #{ffnn_forward.1} parent=0 // pred_fallthru
    _
  // Predicated region
  $region18: #{ffnn_forward.1} parent=0 // pred_check
    _
  $region19: #{ffnn_forward.1} parent=0 // pred_check_branch
    %19 = sbr.rel (0) target = $region21
  $region20: #{ffnn_forward.1} parent=0 // pred_region
    _
  $region21: #{ffnn_forward.1} parent=0 // pred_fallthru
    _
  %v20 = vld [vmem:[%s0] sm:$0xff]
  %v21 = vld [vmem:[%s0 + $0x8] sm:$0xff]
  %v22 = vld [vmem:[%s0 + $0x10] sm:$0xff]
  %v23 = vld [vmem:[%s0 + $0x18] sm:$0xff]
  %v24 = vld [vmem:[%s0 + $0x20] sm:$0xff]
  %v25 = vld [vmem:[%s0 + $0x28] sm:$0xff]
  %v26 = vld [vmem:[%s0 + $0x30] sm:$0xff]
  %v27 = vld [vmem:[%s1] sm:$0xff]
  %v28 = vld [vmem:[%s1 + $0x8] sm:$0xff]
  %v29 = vld [vmem:[%s1 + $0x10] sm:$0xff]
  %v30 = vld [vmem:[%s1 + $0x18] sm:$0xff]
  %v31 = vld [vmem:[%s1 + $0x20] sm:$0xff]
  %v32 = vld [vmem:[%s1 + $0x28] sm:$0xff]
  %v33 = vld [vmem:[%s1 + $0x30] sm:$0xff]
  %v34 = vld [vmem:[%s1 + $0x38] sm:$0xff]
  %v35 = vld [vmem:[%s1 + $0x40] sm:$0xff]
  %v36 = vld [vmem:[%s1 + $0x48] sm:$0xff]
  %v37 = vld [vmem:[%s1 + $0x50] sm:$0xff]
  %v38 = vld [vmem:[%s1 + $0x58] sm:$0xff]
  %v39 = vld [vmem:[%s1 + $0x60] sm:$0xff]
  %v40 = vld [vmem:[%s1 + $0x68] sm:$0xff]
  %v41 = vld [vmem:[%s1 + $0x70] sm:$0xff]
  %v42 = vld [vmem:[%s1 + $0x78] sm:$0xff]
  %v43 = vld [vmem:[%s1 + $0x80] sm:$0xff]
  %v44 = vld [vmem:[%s1 + $0x88] sm:$0xff]
  %v45 = vld [vmem:[%s1 + $0x90] sm:$0xff]
  %v46 = vld [vmem:[%s1 + $0x98] sm:$0xff]
  %v47 = vld [vmem:[%s1 + $0xa0] sm:$0xff]
  %v48 = vld [vmem:[%s1 + $0xa8] sm:$0xff]
  %v49 = vld [vmem:[%s1 + $0xb0] sm:$0xff]
  %v50 = vld [vmem:[%s1 + $0xb8] sm:$0xff]
  %v51 = vld [vmem:[%s1 + $0xc0] sm:$0xff]
  %v52 = vld [vmem:[%s1 + $0xc8] sm:$0xff]
  %v53 = vld [vmem:[%s1 + $0xd0] sm:$0xff]
  %v54 = vld [vmem:[%s1 + $0xd8] sm:$0xff]
  %v55 = vld [vmem:[%s1 + $0xe0] sm:$0xff]
  %v56 = vld [vmem:[%s1 + $0xe8] sm:$0xff]
  %v57 = vld [vmem:[%s1 + $0xf0] sm:$0xff]
  %v58 = vld [vmem:[%s1 + $0xf8] sm:$0xff]
  %v59 = vld [vmem:[%s1 + $0x100] sm:$0xff]
  %v60 = vld [vmem:[%s1 + $0x108] sm:$0xff]
  %v61 = vld [vmem:[%s1 + $0x110] sm:$0xff]
  %v62 = vld [vmem:[%s1 + $0x118] sm:$0xff]
  %v63 = vld [vmem:[%s1 + $0x120] sm:$0xff]
  %v64 = vld [vmem:[%s1 + $0x128] sm:$0xff]
  %v65 = vld [vmem:[%s1 + $0x130] sm:$0xff]
  %v66 = vld [vmem:[%s1 + $0x138] sm:$0xff]
  %v67 = vld [vmem:[%s1 + $0x140] sm:$0xff]
  %v68 = vld [vmem:[%s1 + $0x148] sm:$0xff]
  %v69 = vld [vmem:[%s1 + $0x150] sm:$0xff]
  %v70 = vld [vmem:[%s1 + $0x158] sm:$0xff]
  %v71 = vld [vmem:[%s1 + $0x160] sm:$0xff]
  %v72 = vld [vmem:[%s1 + $0x168] sm:$0xff]
  %v73 = vld [vmem:[%s1 + $0x170] sm:$0xff]
  %v74 = vld [vmem:[%s1 + $0x178] sm:$0xff]
  %v75 = vld [vmem:[%s1 + $0x180] sm:$0xff]
  %v76 = vld [vmem:[%s1 + $0x188] sm:$0xff]
  %v77 = vld [vmem:[%s1 + $0x190] sm:$0xff]
  %v78 = vld [vmem:[%s1 + $0x198] sm:$0xff]
  %v79 = vld [vmem:[%s1 + $0x1a0] sm:$0xff]
  %v80 = vld [vmem:[%s1 + $0x1a8] sm:$0xff]
  %v81 = vld [vmem:[%s1 + $0x1b0] sm:$0xff]
  %v82 = vld [vmem:[%s1 + $0x1b8] sm:$0xff]
  %v83 = vld [vmem:[%s1 + $0x1c0] sm:$0xff]
  %v84 = vld [vmem:[%s1 + $0x1c8] sm:$0xff]
  %v85 = vld [vmem:[%s1 + $0x1d0] sm:$0xff]
  %v86 = vld [vmem:[%s1 + $0x1d8] sm:$0xff]
  %v87 = vld [vmem:[%s1 + $0x1e0] sm:$0xff]
  %v88 = vld [vmem:[%s1 + $0x1e8] sm:$0xff]
  %v89 = vld [vmem:[%s1 + $0x1f0] sm:$0xff]
  %v90 = vld [vmem:[%s1 + $0x1f8] sm:$0xff]
  %v91 = vld [vmem:[%s1 + $0x200] sm:$0xff]
  %v92 = vld [vmem:[%s1 + $0x208] sm:$0xff]
  %v93 = vld [vmem:[%s1 + $0x210] sm:$0xff]
  %v94 = vld [vmem:[%s1 + $0x218] sm:$0xff]
  %v95 = vld [vmem:[%s1 + $0x220] sm:$0xff]
  %v96 = vld [vmem:[%s1 + $0x228] sm:$0xff]
  %v97 = vld [vmem:[%s1 + $0x230] sm:$0xff]
  %v98 = vld [vmem:[%s1 + $0x238] sm:$0xff]
  %v99 = vld [vmem:[%s1 + $0x240] sm:$0xff]
  %v100 = vld [vmem:[%s1 + $0x248] sm:$0xff]
  %v101 = vld [vmem:[%s1 + $0x250] sm:$0xff]
  %v102 = vld [vmem:[%s1 + $0x258] sm:$0xff]
  %v103 = vld [vmem:[%s1 + $0x260] sm:$0xff]
  %v104 = vld [vmem:[%s1 + $0x268] sm:$0xff]
  %v105 = vld [vmem:[%s1 + $0x270] sm:$0xff]
  %v106 = vld [vmem:[%s1 + $0x278] sm:$0xff]
  %v107 = vld [vmem:[%s1 + $0x280] sm:$0xff]
  %v108 = vld [vmem:[%s1 + $0x288] sm:$0xff]
  %v109 = vld [vmem:[%s1 + $0x290] sm:$0xff]
  %v110 = vld [vmem:[%s1 + $0x298] sm:$0xff]
  %v111 = vld [vmem:[%s1 + $0x2a0] sm:$0xff]
  %v112 = vld [vmem:[%s1 + $0x2a8] sm:$0xff]
  %v113 = vld [vmem:[%s1 + $0x2b0] sm:$0xff]
  %v114 = vld [vmem:[%s1 + $0x2b8] sm:$0xff]
  %v115 = vld [vmem:[%s1 + $0x2c0] sm:$0xff]
  %v116 = vld [vmem:[%s1 + $0x2c8] sm:$0xff]
  %v117 = vld [vmem:[%s1 + $0x2d0] sm:$0xff]
  %v118 = vld [vmem:[%s1 + $0x2d8] sm:$0xff]
  %v119 = vld [vmem:[%s1 + $0x2e0] sm:$0xff]
  %v120 = vld [vmem:[%s1 + $0x2e8] sm:$0xff]
  %v121 = vld [vmem:[%s1 + $0x2f0] sm:$0xff]
  %v122 = vld [vmem:[%s1 + $0x2f8] sm:$0xff]
  %v123 = vld [vmem:[%s1 + $0x300] sm:$0xff]
  %v124 = vld [vmem:[%s1 + $0x308] sm:$0xff]
  %v125 = vld [vmem:[%s2] sm:$0x1]
  %v127 = vlaneseq
  %v128 = vshrl.u32 %v127, 7
  %v129 = vsub.s32 0, %v128
  %v130 = vrot.slane %v125, %v129
  %vm132 = vcmask 130048
  %v134 = vsel %vm132, %v26, 0
  %136 = vmatprep.subr.mxu0 0.0
  %137 = vmatpush1.msra.mxu0 %v42
  %138 = vmatprep.subr.mxu0 0.0
  %139 = vmatpush1.msra.mxu0 %v41
  %140 = vmatprep.subr.mxu0 0.0
  %141 = vmatpush1.msra.mxu0 %v40
  %142 = vmatprep.subr.mxu0 0.0
  %143 = vmatpush1.msra.mxu0 %v39
  %144 = vmatprep.subr.mxu0 0.0
  %145 = vmatpush1.msra.mxu0 %v38
  %146 = vmatprep.subr.mxu0 0.0
  %147 = vmatpush1.msra.mxu0 %v37
  %148 = vmatprep.subr.mxu0 0.0
  %149 = vmatpush1.msra.mxu0 %v36
  %150 = vmatprep.subr.mxu0 0.0
  %151 = vmatpush1.msra.mxu0 %v35
  %152 = vmatprep.subr.mxu0 0.0
  %153 = vmatpush1.msra.mxu0 %v34
  %154 = vmatprep.subr.mxu0 0.0
  %155 = vmatpush1.msra.mxu0 %v33
  %156 = vmatprep.subr.mxu0 0.0
  %157 = vmatpush1.msra.mxu0 %v32
  %158 = vmatprep.subr.mxu0 0.0
  %159 = vmatpush1.msra.mxu0 %v31
  %160 = vmatprep.subr.mxu0 0.0
  %161 = vmatpush1.msra.mxu0 %v30
  %162 = vmatprep.subr.mxu0 0.0
  %163 = vmatpush1.msra.mxu0 %v29
  %164 = vmatprep.subr.mxu0 0.0
  %165 = vmatpush1.msra.mxu0 %v28
  %166 = vmatprep.subr.mxu0 0.0
  %167 = vmatpush1.msra.mxu0 %v27
  %168 = vmatprep.subr.mxu0 0.0
  %169 = vmatpush2.msra.mxu0 %v58
  %170 = vmatprep.subr.mxu0 0.0
  %171 = vmatpush2.msra.mxu0 %v57
  %172 = vmatprep.subr.mxu0 0.0
  %173 = vmatpush2.msra.mxu0 %v56
  %174 = vmatprep.subr.mxu0 0.0
  %175 = vmatpush2.msra.mxu0 %v55
  %176 = vmatprep.subr.mxu0 0.0
  %177 = vmatpush2.msra.mxu0 %v54
  %178 = vmatprep.subr.mxu0 0.0
  %179 = vmatpush2.msra.mxu0 %v53
  %180 = vmatprep.subr.mxu0 0.0
  %181 = vmatpush2.msra.mxu0 %v52
  %182 = vmatprep.subr.mxu0 0.0
  %183 = vmatpush2.msra.mxu0 %v51
  %184 = vmatprep.subr.mxu0 0.0
  %185 = vmatpush2.msra.mxu0 %v50
  %186 = vmatprep.subr.mxu0 0.0
  %187 = vmatpush2.msra.mxu0 %v49
  %188 = vmatprep.subr.mxu0 0.0
  %189 = vmatpush2.msra.mxu0 %v48
  %190 = vmatprep.subr.mxu0 0.0
  %191 = vmatpush2.msra.mxu0 %v47
  %192 = vmatprep.subr.mxu0 0.0
  %193 = vmatpush2.msra.mxu0 %v46
  %194 = vmatprep.subr.mxu0 0.0
  %195 = vmatpush2.msra.mxu0 %v45
  %196 = vmatprep.subr.mxu0 0.0
  %197 = vmatpush2.msra.mxu0 %v44
  %198 = vmatprep.subr.mxu0 0.0
  %199 = vmatpush2.msra.mxu0 %v43
  %200 = vmatprep.mubr.f32.mxu0 %v21
  %201 = vmatmul.mubr.f32.gmra.mxu0 %v20
  %v202 = vpop.f32.mrf.mxu0
  %v203 = vadd.f32 %v130, %v202
  %v204 = vpop.f32.mrf.mxu0
  %205 = vdwg.mxu0
  %206 = vmatprep.subr.mxu0 0.0
  %207 = vmatpush1.msra.mxu0 %v74
  %208 = vmatprep.subr.mxu0 0.0
  %209 = vmatpush1.msra.mxu0 %v73
  %210 = vmatprep.subr.mxu0 0.0
  %211 = vmatpush1.msra.mxu0 %v72
  %212 = vmatprep.subr.mxu0 0.0
  %213 = vmatpush1.msra.mxu0 %v71
  %214 = vmatprep.subr.mxu0 0.0
  %215 = vmatpush1.msra.mxu0 %v70
  %216 = vmatprep.subr.mxu0 0.0
  %217 = vmatpush1.msra.mxu0 %v69
  %218 = vmatprep.subr.mxu0 0.0
  %219 = vmatpush1.msra.mxu0 %v68
  %220 = vmatprep.subr.mxu0 0.0
  %221 = vmatpush1.msra.mxu0 %v67
  %222 = vmatprep.subr.mxu0 0.0
  %223 = vmatpush1.msra.mxu0 %v66
  %224 = vmatprep.subr.mxu0 0.0
  %225 = vmatpush1.msra.mxu0 %v65
  %226 = vmatprep.subr.mxu0 0.0
  %227 = vmatpush1.msra.mxu0 %v64
  %228 = vmatprep.subr.mxu0 0.0
  %229 = vmatpush1.msra.mxu0 %v63
  %230 = vmatprep.subr.mxu0 0.0
  %231 = vmatpush1.msra.mxu0 %v62
  %232 = vmatprep.subr.mxu0 0.0
  %233 = vmatpush1.msra.mxu0 %v61
  %234 = vmatprep.subr.mxu0 0.0
  %235 = vmatpush1.msra.mxu0 %v60
  %236 = vmatprep.subr.mxu0 0.0
  %237 = vmatpush1.msra.mxu0 %v59
  %238 = vmatprep.subr.mxu0 0.0
  %239 = vmatpush2.msra.mxu0 %v90
  %240 = vmatprep.subr.mxu0 0.0
  %241 = vmatpush2.msra.mxu0 %v89
  %242 = vmatprep.subr.mxu0 0.0
  %243 = vmatpush2.msra.mxu0 %v88
  %244 = vmatprep.subr.mxu0 0.0
  %245 = vmatpush2.msra.mxu0 %v87
  %246 = vmatprep.subr.mxu0 0.0
  %247 = vmatpush2.msra.mxu0 %v86
  %248 = vmatprep.subr.mxu0 0.0
  %249 = vmatpush2.msra.mxu0 %v85
  %250 = vmatprep.subr.mxu0 0.0
  %251 = vmatpush2.msra.mxu0 %v84
  %252 = vmatprep.subr.mxu0 0.0
  %253 = vmatpush2.msra.mxu0 %v83
  %254 = vmatprep.subr.mxu0 0.0
  %255 = vmatpush2.msra.mxu0 %v82
  %256 = vmatprep.subr.mxu0 0.0
  %257 = vmatpush2.msra.mxu0 %v81
  %258 = vmatprep.subr.mxu0 0.0
  %259 = vmatpush2.msra.mxu0 %v80
  %260 = vmatprep.subr.mxu0 0.0
  %261 = vmatpush2.msra.mxu0 %v79
  %262 = vmatprep.subr.mxu0 0.0
  %263 = vmatpush2.msra.mxu0 %v78
  %264 = vmatprep.subr.mxu0 0.0
  %265 = vmatpush2.msra.mxu0 %v77
  %266 = vmatprep.subr.mxu0 0.0
  %267 = vmatpush2.msra.mxu0 %v76
  %268 = vmatprep.subr.mxu0 0.0
  %269 = vmatpush2.msra.mxu0 %v75
  %270 = vmatprep.mubr.f32.mxu0 %v23
  %271 = vmatmul.mubr.f32.gmra.mxu0 %v22
  %v272 = vpop.f32.mrf.mxu0
  %v273 = vadd.f32 %v203, %v272
  %v274 = vpop.f32.mrf.mxu0
  %275 = vdwg.mxu0
  %276 = vmatprep.subr.mxu0 0.0
  %277 = vmatpush1.msra.mxu0 %v106
  %278 = vmatprep.subr.mxu0 0.0
  %279 = vmatpush1.msra.mxu0 %v105
  %280 = vmatprep.subr.mxu0 0.0
  %281 = vmatpush1.msra.mxu0 %v104
  %282 = vmatprep.subr.mxu0 0.0
  %283 = vmatpush1.msra.mxu0 %v103
  %284 = vmatprep.subr.mxu0 0.0
  %285 = vmatpush1.msra.mxu0 %v102
  %286 = vmatprep.subr.mxu0 0.0
  %287 = vmatpush1.msra.mxu0 %v101
  %288 = vmatprep.subr.mxu0 0.0
  %289 = vmatpush1.msra.mxu0 %v100
  %290 = vmatprep.subr.mxu0 0.0
  %291 = vmatpush1.msra.mxu0 %v99
  %292 = vmatprep.subr.mxu0 0.0
  %293 = vmatpush1.msra.mxu0 %v98
  %294 = vmatprep.subr.mxu0 0.0
  %295 = vmatpush1.msra.mxu0 %v97
  %296 = vmatprep.subr.mxu0 0.0
  %297 = vmatpush1.msra.mxu0 %v96
  %298 = vmatprep.subr.mxu0 0.0
  %299 = vmatpush1.msra.mxu0 %v95
  %300 = vmatprep.subr.mxu0 0.0
  %301 = vmatpush1.msra.mxu0 %v94
  %302 = vmatprep.subr.mxu0 0.0
  %303 = vmatpush1.msra.mxu0 %v93
  %304 = vmatprep.subr.mxu0 0.0
  %305 = vmatpush1.msra.mxu0 %v92
  %306 = vmatprep.subr.mxu0 0.0
  %307 = vmatpush1.msra.mxu0 %v91
  %308 = vmatprep.subr.mxu0 0.0
  %309 = vmatpush2.msra.mxu0 %v122
  %310 = vmatprep.subr.mxu0 0.0
  %311 = vmatpush2.msra.mxu0 %v121
  %312 = vmatprep.subr.mxu0 0.0
  %313 = vmatpush2.msra.mxu0 %v120
  %314 = vmatprep.subr.mxu0 0.0
  %315 = vmatpush2.msra.mxu0 %v119
  %316 = vmatprep.subr.mxu0 0.0
  %317 = vmatpush2.msra.mxu0 %v118
  %318 = vmatprep.subr.mxu0 0.0
  %319 = vmatpush2.msra.mxu0 %v117
  %320 = vmatprep.subr.mxu0 0.0
  %321 = vmatpush2.msra.mxu0 %v116
  %322 = vmatprep.subr.mxu0 0.0
  %323 = vmatpush2.msra.mxu0 %v115
  %324 = vmatprep.subr.mxu0 0.0
  %325 = vmatpush2.msra.mxu0 %v114
  %326 = vmatprep.subr.mxu0 0.0
  %327 = vmatpush2.msra.mxu0 %v113
  %328 = vmatprep.subr.mxu0 0.0
  %329 = vmatpush2.msra.mxu0 %v112
  %330 = vmatprep.subr.mxu0 0.0
  %331 = vmatpush2.msra.mxu0 %v111
  %332 = vmatprep.subr.mxu0 0.0
  %333 = vmatpush2.msra.mxu0 %v110
  %334 = vmatprep.subr.mxu0 0.0
  %335 = vmatpush2.msra.mxu0 %v109
  %336 = vmatprep.subr.mxu0 0.0
  %337 = vmatpush2.msra.mxu0 %v108
  %338 = vmatprep.subr.mxu0 0.0
  %339 = vmatpush2.msra.mxu0 %v107
  %340 = vmatprep.mubr.f32.mxu0 %v25
  %341 = vmatmul.mubr.f32.gmra.mxu0 %v24
  %v342 = vpop.f32.mrf.mxu0
  %v343 = vadd.f32 %v273, %v342
  %v344 = vpop.f32.mrf.mxu0
  %345 = vdwg.mxu0
  %346 = vmatprep.subr.mxu0 0.0
  %347 = vmatpush1.msra.mxu0 0.0
  %348 = vmatprep.subr.mxu0 0.0
  %349 = vmatpush1.msra.mxu0 0.0
  %350 = vmatprep.subr.mxu0 0.0
  %351 = vmatpush1.msra.mxu0 0.0
  %352 = vmatprep.subr.mxu0 0.0
  %353 = vmatpush1.msra.mxu0 0.0
  %354 = vmatprep.subr.mxu0 0.0
  %355 = vmatpush1.msra.mxu0 0.0
  %356 = vmatprep.subr.mxu0 0.0
  %357 = vmatpush1.msra.mxu0 0.0
  %358 = vmatprep.subr.mxu0 0.0
  %359 = vmatpush1.msra.mxu0 0.0
  %360 = vmatprep.subr.mxu0 0.0
  %361 = vmatpush1.msra.mxu0 0.0
  %362 = vmatprep.subr.mxu0 0.0
  %363 = vmatpush1.msra.mxu0 0.0
  %364 = vmatprep.subr.mxu0 0.0
  %365 = vmatpush1.msra.mxu0 0.0
  %366 = vmatprep.subr.mxu0 0.0
  %367 = vmatpush1.msra.mxu0 0.0
  %368 = vmatprep.subr.mxu0 0.0
  %369 = vmatpush1.msra.mxu0 0.0
  %370 = vmatprep.subr.mxu0 0.0
  %371 = vmatpush1.msra.mxu0 0.0
  %372 = vmatprep.subr.mxu0 0.0
  %373 = vmatpush1.msra.mxu0 0.0
  %374 = vmatprep.subr.mxu0 0.0
  %375 = vmatpush1.msra.mxu0 %v124
  %376 = vmatprep.subr.mxu0 0.0
  %377 = vmatpush1.msra.mxu0 %v123
  %378 = vmatprep.subr.mxu0 0.0
  %379 = vmatpush2.msra.mxu0 0.0
  %380 = vmatprep.subr.mxu0 0.0
  %381 = vmatpush2.msra.mxu0 0.0
  %382 = vmatprep.subr.mxu0 0.0
  %383 = vmatpush2.msra.mxu0 0.0
  %384 = vmatprep.subr.mxu0 0.0
  %385 = vmatpush2.msra.mxu0 0.0
  %386 = vmatprep.subr.mxu0 0.0
  %387 = vmatpush2.msra.mxu0 0.0
  %388 = vmatprep.subr.mxu0 0.0
  %389 = vmatpush2.msra.mxu0 0.0
  %390 = vmatprep.subr.mxu0 0.0
  %391 = vmatpush2.msra.mxu0 0.0
  %392 = vmatprep.subr.mxu0 0.0
  %393 = vmatpush2.msra.mxu0 0.0
  %394 = vmatprep.subr.mxu0 0.0
  %395 = vmatpush2.msra.mxu0 0.0
  %396 = vmatprep.subr.mxu0 0.0
  %397 = vmatpush2.msra.mxu0 0.0
  %398 = vmatprep.subr.mxu0 0.0
  %399 = vmatpush2.msra.mxu0 0.0
  %400 = vmatprep.subr.mxu0 0.0
  %401 = vmatpush2.msra.mxu0 0.0
  %402 = vmatprep.subr.mxu0 0.0
  %403 = vmatpush2.msra.mxu0 0.0
  %404 = vmatprep.subr.mxu0 0.0
  %405 = vmatpush2.msra.mxu0 0.0
  %406 = vmatprep.subr.mxu0 0.0
  %407 = vmatpush2.msra.mxu0 0.0
  %408 = vmatprep.subr.mxu0 0.0
  %409 = vmatpush2.msra.mxu0 0.0
  %410 = vmatprep.mubr.f32.mxu0 0.0
  %411 = vmatmul.mubr.f32.gmra.mxu0 %v134
  %v412 = vpop.f32.mrf.mxu0
  %v413 = vadd.f32 %v343, %v412
  %v414 = vpop.f32.mrf.mxu0
  %415 = vdwg.mxu0
  %v416 = vmax.f32 %v413, 0.0
  %v417 = vld [vmem:[%s3] sm:$0xff]
  %v418 = vld [vmem:[%s3 + $0x8] sm:$0xff]
  %v419 = vld [vmem:[%s3 + $0x10] sm:$0xff]
  %v420 = vld [vmem:[%s3 + $0x18] sm:$0xff]
  %v421 = vld [vmem:[%s3 + $0x20] sm:$0xff]
  %v422 = vld [vmem:[%s3 + $0x28] sm:$0xff]
  %v423 = vld [vmem:[%s3 + $0x30] sm:$0xff]
  %v424 = vld [vmem:[%s3 + $0x38] sm:$0xff]
  %v425 = vld [vmem:[%s4] sm:$0x1]
  %v427 = vlaneseq
  %v428 = vshrl.u32 %v427, 7
  %v429 = vsub.s32 0, %v428
  %v430 = vrot.slane %v425, %v429
  %vm432 = vcmask 523264
  %v434 = vsel %vm432, %v416, 0
  %436 = vmatprep.subr.mxu0 0.0
  %437 = vmatpush1.msra.mxu0 0.0
  %438 = vmatprep.subr.mxu0 0.0
  %439 = vmatpush1.msra.mxu0 0.0
  %440 = vmatprep.subr.mxu0 0.0
  %441 = vmatpush1.msra.mxu0 0.0
  %442 = vmatprep.subr.mxu0 0.0
  %443 = vmatpush1.msra.mxu0 0.0
  %444 = vmatprep.subr.mxu0 0.0
  %445 = vmatpush1.msra.mxu0 0.0
  %446 = vmatprep.subr.mxu0 0.0
  %447 = vmatpush1.msra.mxu0 0.0
  %448 = vmatprep.subr.mxu0 0.0
  %449 = vmatpush1.msra.mxu0 0.0
  %450 = vmatprep.subr.mxu0 0.0
  %451 = vmatpush1.msra.mxu0 0.0
  %452 = vmatprep.subr.mxu0 0.0
  %453 = vmatpush1.msra.mxu0 %v424
  %454 = vmatprep.subr.mxu0 0.0
  %455 = vmatpush1.msra.mxu0 %v423
  %456 = vmatprep.subr.mxu0 0.0
  %457 = vmatpush1.msra.mxu0 %v422
  %458 = vmatprep.subr.mxu0 0.0
  %459 = vmatpush1.msra.mxu0 %v421
  %460 = vmatprep.subr.mxu0 0.0
  %461 = vmatpush1.msra.mxu0 %v420
  %462 = vmatprep.subr.mxu0 0.0
  %463 = vmatpush1.msra.mxu0 %v419
  %464 = vmatprep.subr.mxu0 0.0
  %465 = vmatpush1.msra.mxu0 %v418
  %466 = vmatprep.subr.mxu0 0.0
  %467 = vmatpush1.msra.mxu0 %v417
  %468 = vmatprep.subr.mxu0 0.0
  %469 = vmatpush2.msra.mxu0 0.0
  %470 = vmatprep.subr.mxu0 0.0
  %471 = vmatpush2.msra.mxu0 0.0
  %472 = vmatprep.subr.mxu0 0.0
  %473 = vmatpush2.msra.mxu0 0.0
  %474 = vmatprep.subr.mxu0 0.0
  %475 = vmatpush2.msra.mxu0 0.0
  %476 = vmatprep.subr.mxu0 0.0
  %477 = vmatpush2.msra.mxu0 0.0
  %478 = vmatprep.subr.mxu0 0.0
  %479 = vmatpush2.msra.mxu0 0.0
  %480 = vmatprep.subr.mxu0 0.0
  %481 = vmatpush2.msra.mxu0 0.0
  %482 = vmatprep.subr.mxu0 0.0
  %483 = vmatpush2.msra.mxu0 0.0
  %484 = vmatprep.subr.mxu0 0.0
  %485 = vmatpush2.msra.mxu0 0.0
  %486 = vmatprep.subr.mxu0 0.0
  %487 = vmatpush2.msra.mxu0 0.0
  %488 = vmatprep.subr.mxu0 0.0
  %489 = vmatpush2.msra.mxu0 0.0
  %490 = vmatprep.subr.mxu0 0.0
  %491 = vmatpush2.msra.mxu0 0.0
  %492 = vmatprep.subr.mxu0 0.0
  %493 = vmatpush2.msra.mxu0 0.0
  %494 = vmatprep.subr.mxu0 0.0
  %495 = vmatpush2.msra.mxu0 0.0
  %496 = vmatprep.subr.mxu0 0.0
  %497 = vmatpush2.msra.mxu0 0.0
  %498 = vmatprep.subr.mxu0 0.0
  %499 = vmatpush2.msra.mxu0 0.0
  %500 = vmatprep.mubr.f32.mxu0 0.0
  %501 = vmatmul.mubr.f32.gmra.mxu0 %v434
  %v502 = vpop.f32.mrf.mxu0
  %v503 = vadd.f32 %v430, %v502
  %v504 = vpop.f32.mrf.mxu0
  %505 = vdwg.mxu0
  %506 = vst [vmem:[%s5] sm:$0xff] %v503
  // Predicated region
  $region22: #{ffnn_forward.1} parent=0 // pred_check
    _
  $region23: #{ffnn_forward.1} parent=0 // pred_check_branch
    %508 = sbr.rel (0) target = $region25
  $region24: #{ffnn_forward.1} parent=0 // pred_region
    _
  $region25: #{ffnn_forward.1} parent=0 // pred_fallthru
    _
  // Predicated region
  $region26: #{ffnn_forward.1} parent=0 // pred_check
    _
  $region27: #{ffnn_forward.1} parent=0 // pred_check_branch
    %510 = sbr.rel (0) target = $region29
  $region28: #{ffnn_forward.1} parent=0 // pred_region
    _
  $region29: #{ffnn_forward.1} parent=0 // pred_fallthru
    _

</llo_original>
